<compile_context>
chip_gen: v6e
topology: v6e:2x2x1
jax: 0.10.0
libtpu: 0.0.40
codegen_flags: <defaults>
</compile_context>

<pallas_src>
import math

import jax
import jax.numpy as jnp
from jax.experimental import pallas as pl
from jax.experimental.pallas import tpu as pltpu


def _round_up(n: int, m: int) -> int:
    return (n + m - 1) // m * m


def nn_kernel(x_ref, w1_ref, b1_ref, w2_ref, b2_ref, o_ref):
    # ---- fc1 (bf16 operands, f32 accumulate) + bias + sigmoid ----
    h = jnp.dot(x_ref[...], w1_ref[...], preferred_element_type=jnp.float32)
    h = h + b1_ref[...]
    h = 1.0 / (1.0 + jnp.exp(-h))                       # sigmoid (EUP exp)

    # ---- fc2 (bf16 operands, f32 accumulate) + bias ----
    logits = jnp.dot(h.astype(jnp.bfloat16), w2_ref[...],
                     preferred_element_type=jnp.float32)
    logits = logits + b2_ref[...]                       # padded classes get -1e30

    # ---- softmax along lanes (padded class lanes underflow to exactly 0) ----
    m = jnp.max(logits, axis=-1, keepdims=True)
    p = jnp.exp(logits - m)
    s = jnp.sum(p, axis=-1, keepdims=True)
    o_ref[...] = p / s


def supervised_nn_forward(x, w1, b1, w2, b2, *, tile_b=256):
    """x: (N, F) f32.  w1: (F, H) (= fc1.weight.T), b1: (H,),
    w2: (H, C) (= fc2.weight.T), b2: (C,).  Returns softmax probs (N, C) f32."""
    N, F = x.shape
    F_, H = w1.shape
    H_, C = w2.shape
    assert F_ == F and H_ == H

    # Lane-dense padding of every feature dim (exact; see bias/zero padding below).
    Fp = _round_up(F, 128)
    Hp = _round_up(H, 128)
    Cp = _round_up(C, 128)

    # Batch tile: multiple of 8 sublanes, capped so tiny batches don't over-pad.
    tb = min(_round_up(tile_b, 8), _round_up(N, 8))
    Np = _round_up(N, tb)
    grid = (Np // tb,)

    f32 = jnp.float32
    bf16 = jnp.bfloat16

    # Zero-pad and cast MXU operands to bf16 (f32 accumulation in the kernel).
    xp = jnp.zeros((Np, Fp), bf16).at[:N, :F].set(x.astype(bf16))
    w1p = jnp.zeros((Fp, Hp), bf16).at[:F, :H].set(w1.astype(bf16))
    w2p = jnp.zeros((Hp, Cp), bf16).at[:H, :C].set(w2.astype(bf16))
    b1p = jnp.zeros((1, Hp), f32).at[0, :H].set(b1.astype(f32))
    # Padded class logits get a huge negative bias so softmax ignores them exactly.
    b2p = jnp.full((1, Cp), -1e30, f32).at[0, :C].set(b2.astype(f32))

    cost = pl.CostEstimate(
        flops=2 * Np * (Fp * Hp + Hp * Cp),
        transcendentals=Np * (Hp + Cp),
        bytes_accessed=(xp.size * 2 + w1p.size * 2 + w2p.size * 2
                        + b1p.size * 4 + b2p.size * 4 + Np * Cp * 4),
    )

    out = pl.pallas_call(
        nn_kernel,
        out_shape=jax.ShapeDtypeStruct((Np, Cp), f32),
        grid=grid,
        in_specs=[
            pl.BlockSpec((tb, Fp), lambda i: (i, 0)),    # x tile
            pl.BlockSpec((Fp, Hp), lambda i: (0, 0)),    # w1 (resident)
            pl.BlockSpec((1, Hp), lambda i: (0, 0)),     # b1
            pl.BlockSpec((Hp, Cp), lambda i: (0, 0)),    # w2 (resident)
            pl.BlockSpec((1, Cp), lambda i: (0, 0)),     # b2 (padded with -1e30)
        ],
        out_specs=pl.BlockSpec((tb, Cp), lambda i: (i, 0)),
        compiler_params=pltpu.CompilerParams(
            dimension_semantics=("parallel",)),
        cost_estimate=cost,
    )(xp, w1p, b1p, w2p, b2p)

    return out[:N, :C]


def reference_forward(x, w1, b1, w2, b2):
    """Pure-JAX f32 reference of Supervised_NN.forward (eval semantics)."""
    h = jax.nn.sigmoid(x @ w1 + b1)
    logits = h @ w2 + b2
    return jax.nn.softmax(logits, axis=1)


if __name__ == "__main__":
    key = jax.random.PRNGKey(0)
    kw1, kb1, kw2, kb2, kx = jax.random.split(key, 5)

    # Small shapes consistent with the module: batch=64 (its batch_size),
    # len(feature_names)=16, hidden_size=32, output_size=5.
    N, F, H, C = 64, 16, 32, 5

    bound1 = 1.0 / math.sqrt(F)
    w1 = jax.random.uniform(kw1, (F, H), jnp.float32, -bound1, bound1)  # fc1.weight.T
    b1 = jax.random.uniform(kb1, (H,), jnp.float32, -bound1, bound1)
    bound2 = 1.0 / math.sqrt(H)
    w2 = jax.random.uniform(kw2, (H, C), jnp.float32, -bound2, bound2)  # fc2.weight.T
    b2 = jax.random.uniform(kb2, (C,), jnp.float32, -bound2, bound2)

    x = jax.random.normal(kx, (N, F), jnp.float32)

    out = supervised_nn_forward(x, w1, b1, w2, b2, tile_b=256)
    out = jax.block_until_ready(out)

    ref = reference_forward(x, w1, b1, w2, b2)
    assert out.shape == (N, C)
    assert bool(jnp.all(jnp.isfinite(out)))
    # rows are probability distributions
    assert jnp.allclose(jnp.sum(out, axis=1), 1.0, atol=1e-3)
    # bf16 matmul operands vs f32 reference -> loose-ish tolerance
    assert jnp.allclose(out, ref, atol=2e-2, rtol=2e-2)

    print("KERNEL_OK")
</pallas_src>

<mosaic_0001>
module attributes {stable_mosaic.version = 11 : i64} {
  func.func @nn_kernel(%arg0: i32, %arg1: memref<64x128xbf16, #tpu.memory_space<vmem>>, %arg2: memref<128x128xbf16, #tpu.memory_space<vmem>>, %arg3: memref<1x128xf32, #tpu.memory_space<vmem>>, %arg4: memref<128x128xbf16, #tpu.memory_space<vmem>>, %arg5: memref<1x128xf32, #tpu.memory_space<vmem>>, %arg6: memref<64x128xf32, #tpu.memory_space<vmem>>) attributes {dimension_semantics = [#tpu.dimension_semantics<parallel>], iteration_bounds = array<i64: 1>, scalar_prefetch = 0 : i64, scratch_operands = 0 : i64, tpu.core_type = #tpu.core_type<tc>, window_params = [{transform_indices = @transform_0, window_bounds = array<i64: 64, 128>}, {pipeline_mode = #tpu.pipeline_mode<synchronous>, transform_indices = @transform_1, window_bounds = array<i64: 128, 128>}, {pipeline_mode = #tpu.pipeline_mode<synchronous>, transform_indices = @transform_2, window_bounds = array<i64: 1, 128>}, {pipeline_mode = #tpu.pipeline_mode<synchronous>, transform_indices = @transform_3, window_bounds = array<i64: 128, 128>}, {pipeline_mode = #tpu.pipeline_mode<synchronous>, transform_indices = @transform_4, window_bounds = array<i64: 1, 128>}, {transform_indices = @transform_5, window_bounds = array<i64: 64, 128>}]} {
    %c0 = arith.constant 0 : index
    %c0_0 = arith.constant 0 : index
    %0 = vector.load %arg1[%c0, %c0_0] : memref<64x128xbf16, #tpu.memory_space<vmem>>, vector<64x128xbf16>
    %c0_1 = arith.constant 0 : index
    %c0_2 = arith.constant 0 : index
    %1 = vector.load %arg2[%c0_1, %c0_2] : memref<128x128xbf16, #tpu.memory_space<vmem>>, vector<128x128xbf16>
    %cst = arith.constant dense<0.000000e+00> : vector<64x128xf32>
    %2 = tpu.matmul %0, %1, %cst {dimension_numbers = #tpu.dot_dimension_numbers<[1], [0], [0], [1], [0, 0, 1, 1], [], []>} : vector<64x128xbf16>, vector<128x128xbf16>, vector<64x128xf32> -> vector<64x128xf32>
    %c0_3 = arith.constant 0 : index
    %c0_4 = arith.constant 0 : index
    %3 = vector.load %arg3[%c0_3, %c0_4] : memref<1x128xf32, #tpu.memory_space<vmem>>, vector<1x128xf32>
    %4 = vector.broadcast %3 : vector<1x128xf32> to vector<64x128xf32>
    %5 = arith.addf %2, %4 : vector<64x128xf32>
    %cst_5 = arith.constant 0.000000e+00 : f32
    %6 = vector.broadcast %cst_5 : f32 to vector<64x128xf32>
    %7 = arith.subf %6, %5 : vector<64x128xf32>
    %8 = math.exp %7 : vector<64x128xf32>
    %cst_6 = arith.constant 1.000000e+00 : f32
    %9 = vector.broadcast %cst_6 : f32 to vector<64x128xf32>
    %10 = arith.addf %9, %8 : vector<64x128xf32>
    %cst_7 = arith.constant 1.000000e+00 : f32
    %11 = vector.broadcast %cst_7 : f32 to vector<64x128xf32>
    %12 = arith.divf %11, %10 : vector<64x128xf32>
    %13 = arith.truncf %12 : vector<64x128xf32> to vector<64x128xbf16>
    %c0_8 = arith.constant 0 : index
    %c0_9 = arith.constant 0 : index
    %14 = vector.load %arg4[%c0_8, %c0_9] : memref<128x128xbf16, #tpu.memory_space<vmem>>, vector<128x128xbf16>
    %cst_10 = arith.constant dense<0.000000e+00> : vector<64x128xf32>
    %15 = tpu.matmul %13, %14, %cst_10 {dimension_numbers = #tpu.dot_dimension_numbers<[1], [0], [0], [1], [0, 0, 1, 1], [], []>} : vector<64x128xbf16>, vector<128x128xbf16>, vector<64x128xf32> -> vector<64x128xf32>
    %c0_11 = arith.constant 0 : index
    %c0_12 = arith.constant 0 : index
    %16 = vector.load %arg5[%c0_11, %c0_12] : memref<1x128xf32, #tpu.memory_space<vmem>>, vector<1x128xf32>
    %17 = vector.broadcast %16 : vector<1x128xf32> to vector<64x128xf32>
    %18 = arith.addf %15, %17 : vector<64x128xf32>
    %cst_13 = arith.constant dense<0xFF800000> : vector<64xf32>
    %19 = vector.multi_reduction <maximumf>, %18, %cst_13 [1] : vector<64x128xf32> to vector<64xf32>
    %20 = vector.shape_cast %19 : vector<64xf32> to vector<64x1xf32>
    %21 = vector.broadcast %20 : vector<64x1xf32> to vector<64x128xf32>
    %22 = arith.subf %18, %21 : vector<64x128xf32>
    %23 = math.exp %22 : vector<64x128xf32>
    %cst_14 = arith.constant dense<0.000000e+00> : vector<64xf32>
    %24 = vector.multi_reduction <add>, %23, %cst_14 [1] : vector<64x128xf32> to vector<64xf32>
    %25 = vector.shape_cast %24 : vector<64xf32> to vector<64x1xf32>
    %26 = vector.broadcast %25 : vector<64x1xf32> to vector<64x128xf32>
    %27 = arith.divf %23, %26 : vector<64x128xf32>
    %c0_15 = arith.constant 0 : index
    %c0_16 = arith.constant 0 : index
    %28 = vector.load %arg6[%c0_15, %c0_16] : memref<64x128xf32, #tpu.memory_space<vmem>>, vector<64x128xf32>
    tpu.vector_store %arg6[%c0_15, %c0_16], %27 {strides = array<i32>} : memref<64x128xf32, #tpu.memory_space<vmem>>, vector<64x128xf32>,
    return
  }
  func.func @transform_0(%arg0: i32) -> (i32, i32) {
    %c0_i32 = arith.constant 0 : i32
    %c0_i32_0 = arith.constant 0 : i32
    return %arg0, %c0_i32 : i32, i32
  }
  func.func @transform_1(%arg0: i32) -> (i32, i32) {
    %c0_i32 = arith.constant 0 : i32
    %c0_i32_0 = arith.constant 0 : i32
    %c0_i32_1 = arith.constant 0 : i32
    return %c0_i32, %c0_i32_0 : i32, i32
  }
  func.func @transform_2(%arg0: i32) -> (i32, i32) {
    %c0_i32 = arith.constant 0 : i32
    %c0_i32_0 = arith.constant 0 : i32
    %c0_i32_1 = arith.constant 0 : i32
    return %c0_i32, %c0_i32_0 : i32, i32
  }
  func.func @transform_3(%arg0: i32) -> (i32, i32) {
    %c0_i32 = arith.constant 0 : i32
    %c0_i32_0 = arith.constant 0 : i32
    %c0_i32_1 = arith.constant 0 : i32
    return %c0_i32, %c0_i32_0 : i32, i32
  }
  func.func @transform_4(%arg0: i32) -> (i32, i32) {
    %c0_i32 = arith.constant 0 : i32
    %c0_i32_0 = arith.constant 0 : i32
    %c0_i32_1 = arith.constant 0 : i32
    return %c0_i32, %c0_i32_0 : i32, i32
  }
  func.func @transform_5(%arg0: i32) -> (i32, i32) {
    %c0_i32 = arith.constant 0 : i32
    %c0_i32_0 = arith.constant 0 : i32
    return %arg0, %c0_i32 : i32, i32
  }
}

</mosaic_0001>

<llo_original>
// kernel: tpu_custom_call.1
$region0: #{tpu_custom_call.1}
  #allocation0 [shape = 'u32[]', space=smem, size = 0x4, offset = 0x4, fixed_abs, tag = 'smem constant byte address 0x4 - core index']
  #allocation1 [shape = 'u32[144,128]{1,0:T(1,128)}', space=vmem, size = 0x12000, scoped, tag = 'internal scratch']
  %s0 = inlined_call_operand.hbm [shape: bf16[64,128], index: 0, kind: input, shape index: {}]
  %s1 = inlined_call_operand.hbm [shape: bf16[128,128], index: 1, kind: input, shape index: {}]
  %s2 = inlined_call_operand.vmem [shape: f32[1,128], index: 2, kind: input, shape index: {}]
  %s3 = inlined_call_operand.hbm [shape: bf16[128,128], index: 3, kind: input, shape index: {}]
  %s4 = inlined_call_operand.vmem [shape: f32[1,128], index: 4, kind: input, shape index: {}]
  %s5 = inlined_call_operand.hbm [shape: f32[64,128], index: 5, kind: output, shape index: {}]
  %s6 = sld [smem:[#allocation0]]
  $region42: #{tpu_custom_call.1} parent=0
    _
  %s8 = ssub.s32 1, %s6
  %s9 = scalar_select 0, %s8, %s6
  $region1: #{tpu_custom_call.1} parent=0
    #allocation2 [shape = 'u8[16384]{0}', space=vmem, size = 0x4000, scoped, tag = 'input window, operand 0, single buffered']
    #allocation3 [shape = 's32[1]{0}', space=sflag, size = 0x4, scoped, tag = 'scoped memory for tpu_custom_call.1']
    #allocation4 [shape = 's32[1]{0}', space=sflag, size = 0x4, scoped, tag = 'scoped memory for tpu_custom_call.1']
    #allocation5 [shape = 'u8[32768]{0}', space=vmem, size = 0x8000, scoped, tag = 'input window, operand 1, single buffered']
    #allocation6 [shape = 's32[1]{0}', space=sflag, size = 0x4, scoped, tag = 'scoped memory for tpu_custom_call.1']
    #allocation7 [shape = 'u8[32768]{0}', space=vmem, size = 0x8000, scoped, tag = 'input window, operand 3, single buffered']
    #allocation8 [shape = 'u8[32768]{0}', space=vmem, size = 0x8000, scoped, tag = 'output window, operand 0, single buffered']
    %10 = vsyncpa [#allocation3], 0
    %11 = vsyncpa [#allocation6], 0
    %12 = vsyncpa [#allocation4], 0
    // Predicated region
    $region2: #{tpu_custom_call.1} parent=1 // pred_check
      _
    $region3: #{tpu_custom_call.1} parent=1 // pred_check_branch
      %14 = sbr.rel (0) target = $region5
    $region4: #{tpu_custom_call.1} parent=1 // pred_region
      %s16 = ssub.s32 512, 512
      %17 = vsyncadd [#allocation3], %s16
      %s18 = sshll.u32 [#allocation2], 4
      %s19 = int_to_ptr.vmem [resolvable:$true] %s18
      %24 = dma.hbm_to_vmem [thread:$0]  %s0, 512, %s19, [#allocation3], 64, 64, 4
    $region5: #{tpu_custom_call.1} parent=1 // pred_fallthru
      _
    // Predicated region
    $region6: #{tpu_custom_call.1} parent=1 // pred_check
      _
    $region7: #{tpu_custom_call.1} parent=1 // pred_check_branch
      %26 = sbr.rel (0) target = $region9
    $region8: #{tpu_custom_call.1} parent=1 // pred_region
      %s28 = ssub.s32 1024, 1024
      %29 = vsyncadd [#allocation6], %s28
      %s30 = sshll.u32 [#allocation5], 4
      %s31 = int_to_ptr.vmem [resolvable:$true] %s30
      %36 = dma.hbm_to_vmem [thread:$0]  %s1, 1024, %s31, [#allocation6], 64, 64, 4
    $region9: #{tpu_custom_call.1} parent=1 // pred_fallthru
      _
    // Predicated region
    $region10: #{tpu_custom_call.1} parent=1 // pred_check
      _
    $region11: #{tpu_custom_call.1} parent=1 // pred_check_branch
      %38 = sbr.rel (0) target = $region13
    $region12: #{tpu_custom_call.1} parent=1 // pred_region
      _
    $region13: #{tpu_custom_call.1} parent=1 // pred_fallthru
      _
    // Predicated region
    $region14: #{tpu_custom_call.1} parent=1 // pred_check
      _
    $region15: #{tpu_custom_call.1} parent=1 // pred_check_branch
      %40 = sbr.rel (0) target = $region17
    $region16: #{tpu_custom_call.1} parent=1 // pred_region
      %s42 = ssub.s32 1024, 1024
      %43 = vsyncadd [#allocation6], %s42
      %s44 = sshll.u32 [#allocation7], 4
      %s45 = int_to_ptr.vmem [resolvable:$true] %s44
      %50 = dma.hbm_to_vmem [thread:$0]  %s3, 1024, %s45, [#allocation6], 64, 64, 4
    $region17: #{tpu_custom_call.1} parent=1 // pred_fallthru
      _
    // Predicated region
    $region18: #{tpu_custom_call.1} parent=1 // pred_check
      _
    $region19: #{tpu_custom_call.1} parent=1 // pred_check_branch
      %52 = sbr.rel (0) target = $region21
    $region20: #{tpu_custom_call.1} parent=1 // pred_region
      _
    $region21: #{tpu_custom_call.1} parent=1 // pred_fallthru
      _
    // Predicated region
    $region22: #{tpu_custom_call.1} parent=1 // pred_check
      _
    $region23: #{tpu_custom_call.1} parent=1 // pred_check_branch
      %54 = sbr.rel (0) target = $region25
    $region24: #{tpu_custom_call.1} parent=1 // pred_region
      %55 = dma.done [#allocation3], 512
    $region25: #{tpu_custom_call.1} parent=1 // pred_fallthru
      _
    // Predicated region
    $region26: #{tpu_custom_call.1} parent=1 // pred_check
      _
    $region27: #{tpu_custom_call.1} parent=1 // pred_check_branch
      %57 = sbr.rel (0) target = $region29
    $region28: #{tpu_custom_call.1} parent=1 // pred_region
      %58 = dma.done [#allocation6], 1024
    $region29: #{tpu_custom_call.1} parent=1 // pred_fallthru
      _
    // Predicated region
    $region30: #{tpu_custom_call.1} parent=1 // pred_check
      _
    $region31: #{tpu_custom_call.1} parent=1 // pred_check_branch
      %60 = sbr.rel (0) target = $region33
    $region32: #{tpu_custom_call.1} parent=1 // pred_region
      %61 = dma.done [#allocation6], 1024
    $region33: #{tpu_custom_call.1} parent=1 // pred_fallthru
      _
    %v63 = vld [vmem:[#allocation2] sm:$0xf]
    %v64 = vld [vmem:[#allocation2 + $0x4] sm:$0xf]
    %v65 = vld [vmem:[#allocation2 + $0x8] sm:$0xf]
    %v66 = vld [vmem:[#allocation2 + $0xc] sm:$0xf]
    %v67 = vld [vmem:[#allocation2 + $0x10] sm:$0xf]
    %v68 = vld [vmem:[#allocation2 + $0x14] sm:$0xf]
    %v69 = vld [vmem:[#allocation2 + $0x18] sm:$0xf]
    %v70 = vld [vmem:[#allocation2 + $0x1c] sm:$0xf]
    %v71 = vld [vmem:[#allocation5] sm:$0xf]
    %v72 = vld [vmem:[#allocation5 + $0x4] sm:$0xf]
    %v73 = vld [vmem:[#allocation5 + $0x8] sm:$0xf]
    %v74 = vld [vmem:[#allocation5 + $0xc] sm:$0xf]
    %v75 = vld [vmem:[#allocation5 + $0x10] sm:$0xf]
    %v76 = vld [vmem:[#allocation5 + $0x14] sm:$0xf]
    %v77 = vld [vmem:[#allocation5 + $0x18] sm:$0xf]
    %v78 = vld [vmem:[#allocation5 + $0x1c] sm:$0xf]
    %v79 = vld [vmem:[#allocation5 + $0x20] sm:$0xf]
    %v80 = vld [vmem:[#allocation5 + $0x24] sm:$0xf]
    %v81 = vld [vmem:[#allocation5 + $0x28] sm:$0xf]
    %v82 = vld [vmem:[#allocation5 + $0x2c] sm:$0xf]
    %v83 = vld [vmem:[#allocation5 + $0x30] sm:$0xf]
    %v84 = vld [vmem:[#allocation5 + $0x34] sm:$0xf]
    %v85 = vld [vmem:[#allocation5 + $0x38] sm:$0xf]
    %v86 = vld [vmem:[#allocation5 + $0x3c] sm:$0xf]
    %v87 = vld [vmem:[%s2] sm:$0x1]
    %v89 = vlaneseq
    %v90 = vshrl.u32 %v89, 7
    %v91 = vsub.s32 0, %v90
    %v92 = vrot.slane %v87, %v91
    %v102 = vunpack.c.l.b16 %v63
    %v103 = vunpack.c.l.b16 %v64
    %v104 = vunpack.c.l.b16 %v65
    %v105 = vunpack.c.l.b16 %v66
    %v106 = vunpack.c.l.b16 %v67
    %v107 = vunpack.c.l.b16 %v68
    %v108 = vunpack.c.l.b16 %v69
    %v109 = vunpack.c.l.b16 %v70
    %v110 = vpack.c.b16 %v103, %v102
    %v111 = vpack.c.b16 %v105, %v104
    %v112 = vpack.c.b16 %v107, %v106
    %v113 = vpack.c.b16 %v109, %v108
    %v134 = vunpack.c.l.b16 %v71
    %v135 = vunpack.c.l.b16 %v72
    %v136 = vunpack.c.l.b16 %v73
    %v137 = vunpack.c.l.b16 %v74
    %v138 = vunpack.c.l.b16 %v75
    %v139 = vunpack.c.l.b16 %v76
    %v140 = vunpack.c.l.b16 %v77
    %v141 = vunpack.c.l.b16 %v78
    %v142 = vunpack.c.l.b16 %v79
    %v143 = vunpack.c.l.b16 %v80
    %v144 = vunpack.c.l.b16 %v81
    %v145 = vunpack.c.l.b16 %v82
    %v146 = vunpack.c.l.b16 %v83
    %v147 = vunpack.c.l.b16 %v84
    %v148 = vunpack.c.l.b16 %v85
    %v149 = vunpack.c.l.b16 %v86
    %v150 = vpack.c.b16 %v135, %v134
    %v151 = vpack.c.b16 %v137, %v136
    %v152 = vpack.c.b16 %v139, %v138
    %v153 = vpack.c.b16 %v141, %v140
    %v154 = vpack.c.b16 %v143, %v142
    %v155 = vpack.c.b16 %v145, %v144
    %v156 = vpack.c.b16 %v147, %v146
    %v157 = vpack.c.b16 %v149, %v148
    %166 = vmatprep.subr.bf16.mxu0 0
    %167 = vmatpush1.bf16.msra.mxu0 %v157
    %168 = vmatprep.subr.bf16.mxu0 0
    %169 = vmatpush1.bf16.msra.mxu0 %v156
    %170 = vmatprep.subr.bf16.mxu0 0
    %171 = vmatpush1.bf16.msra.mxu0 %v155
    %172 = vmatprep.subr.bf16.mxu0 0
    %173 = vmatpush1.bf16.msra.mxu0 %v154
    %174 = vmatprep.subr.bf16.mxu0 0
    %175 = vmatpush1.bf16.msra.mxu0 %v153
    %176 = vmatprep.subr.bf16.mxu0 0
    %177 = vmatpush1.bf16.msra.mxu0 %v152
    %178 = vmatprep.subr.bf16.mxu0 0
    %179 = vmatpush1.bf16.msra.mxu0 %v151
    %180 = vmatprep.subr.bf16.mxu0 0
    %181 = vmatpush1.bf16.msra.mxu0 %v150
    %182 = vmatprep.subr.bf16.mxu0 0
    %183 = vmatpush2.bf16.msra.mxu0 0
    %184 = vmatprep.subr.bf16.mxu0 0
    %185 = vmatpush2.bf16.msra.mxu0 0
    %186 = vmatprep.subr.bf16.mxu0 0
    %187 = vmatpush2.bf16.msra.mxu0 0
    %188 = vmatprep.subr.bf16.mxu0 0
    %189 = vmatpush2.bf16.msra.mxu0 0
    %190 = vmatprep.subr.bf16.mxu0 0
    %191 = vmatpush2.bf16.msra.mxu0 0
    %192 = vmatprep.subr.bf16.mxu0 0
    %193 = vmatpush2.bf16.msra.mxu0 0
    %194 = vmatprep.subr.bf16.mxu0 0
    %195 = vmatpush2.bf16.msra.mxu0 0
    %196 = vmatprep.subr.bf16.mxu0 0
    %197 = vmatpush2.bf16.msra.mxu0 0
    %198 = vmatprep.mubr.bf16.mxu0 0
    %199 = vmatmul.mubr.bf16.gmra.mxu0 %v110
    %v200 = vpop.f32.mrf.mxu0
    %v201 = vadd.f32 %v92, %v200
    %v202 = vpop.f32.mrf.mxu0
    %v203 = vpop.f32.mrf.mxu0
    %v204 = vadd.f32 %v92, %v203
    %v205 = vpop.f32.mrf.mxu0
    %206 = vmatprep.mubr.bf16.mxu0 0
    %207 = vmatmul.mubr.bf16.gmra.mxu0 %v111
    %v208 = vpop.f32.mrf.mxu0
    %v209 = vadd.f32 %v92, %v208
    %v210 = vpop.f32.mrf.mxu0
    %v211 = vpop.f32.mrf.mxu0
    %v212 = vadd.f32 %v92, %v211
    %v213 = vpop.f32.mrf.mxu0
    %214 = vmatprep.mubr.bf16.mxu0 0
    %215 = vmatmul.mubr.bf16.gmra.mxu0 %v112
    %v216 = vpop.f32.mrf.mxu0
    %v217 = vadd.f32 %v92, %v216
    %v218 = vpop.f32.mrf.mxu0
    %v219 = vpop.f32.mrf.mxu0
    %v220 = vadd.f32 %v92, %v219
    %v221 = vpop.f32.mrf.mxu0
    %222 = vmatprep.mubr.bf16.mxu0 0
    %223 = vmatmul.mubr.bf16.gmra.mxu0 %v113
    %v224 = vpop.f32.mrf.mxu0
    %v225 = vadd.f32 %v92, %v224
    %v226 = vpop.f32.mrf.mxu0
    %v227 = vpop.f32.mrf.mxu0
    %v228 = vadd.f32 %v92, %v227
    %v229 = vpop.f32.mrf.mxu0
    %230 = vdwg.mxu0
    %v231 = vsub.f32 0.0, %v201
    %v232 = vsub.f32 0.0, %v204
    %v233 = vsub.f32 0.0, %v209
    %v234 = vsub.f32 0.0, %v212
    %v235 = vsub.f32 0.0, %v217
    %v236 = vsub.f32 0.0, %v220
    %v237 = vsub.f32 0.0, %v225
    %v238 = vsub.f32 0.0, %v228
    %v239 = vmul.f32 %v231, 1.442695
    %v240 = vpow.pop %v239
    %v241 = vmul.f32 %v232, 1.442695
    %v242 = vpow.pop %v241
    %v243 = vmul.f32 %v233, 1.442695
    %v244 = vpow.pop %v243
    %v245 = vmul.f32 %v234, 1.442695
    %v246 = vpow.pop %v245
    %v247 = vmul.f32 %v235, 1.442695
    %v248 = vpow.pop %v247
    %v249 = vmul.f32 %v236, 1.442695
    %v250 = vpow.pop %v249
    %v251 = vmul.f32 %v237, 1.442695
    %v252 = vpow.pop %v251
    %v253 = vmul.f32 %v238, 1.442695
    %v254 = vpow.pop %v253
    %v255 = vadd.f32 %v240, 1.0
    %v256 = vadd.f32 %v242, 1.0
    %v257 = vadd.f32 %v244, 1.0
    %v258 = vadd.f32 %v246, 1.0
    %v259 = vadd.f32 %v248, 1.0
    %v260 = vadd.f32 %v250, 1.0
    %v261 = vadd.f32 %v252, 1.0
    %v262 = vadd.f32 %v254, 1.0
    %v263 = vrcp.pop %v255
    %v264 = vmul.f32 1.0, %v263
    %v265 = vrcp.pop %v256
    %v266 = vmul.f32 1.0, %v265
    %v267 = vrcp.pop %v257
    %v268 = vmul.f32 1.0, %v267
    %v269 = vrcp.pop %v258
    %v270 = vmul.f32 1.0, %v269
    %v271 = vrcp.pop %v259
    %v272 = vmul.f32 1.0, %v271
    %v273 = vrcp.pop %v260
    %v274 = vmul.f32 1.0, %v273
    %v275 = vrcp.pop %v261
    %v276 = vmul.f32 1.0, %v275
    %v277 = vrcp.pop %v262
    %v278 = vmul.f32 1.0, %v277
    %v279 = vpack.c.bf16 %v266, %v264
    %v280 = vpack.c.bf16 %v270, %v268
    %v281 = vpack.c.bf16 %v274, %v272
    %v282 = vpack.c.bf16 %v278, %v276
    %v283 = vld [vmem:[#allocation7] sm:$0xf]
    %v284 = vld [vmem:[#allocation7 + $0x4] sm:$0xf]
    %v285 = vld [vmem:[#allocation7 + $0x8] sm:$0xf]
    %v286 = vld [vmem:[#allocation7 + $0xc] sm:$0xf]
    %v287 = vld [vmem:[#allocation7 + $0x10] sm:$0xf]
    %v288 = vld [vmem:[#allocation7 + $0x14] sm:$0xf]
    %v289 = vld [vmem:[#allocation7 + $0x18] sm:$0xf]
    %v290 = vld [vmem:[#allocation7 + $0x1c] sm:$0xf]
    %v291 = vld [vmem:[#allocation7 + $0x20] sm:$0xf]
    %v292 = vld [vmem:[#allocation7 + $0x24] sm:$0xf]
    %v293 = vld [vmem:[#allocation7 + $0x28] sm:$0xf]
    %v294 = vld [vmem:[#allocation7 + $0x2c] sm:$0xf]
    %v295 = vld [vmem:[#allocation7 + $0x30] sm:$0xf]
    %v296 = vld [vmem:[#allocation7 + $0x34] sm:$0xf]
    %v297 = vld [vmem:[#allocation7 + $0x38] sm:$0xf]
    %v298 = vld [vmem:[#allocation7 + $0x3c] sm:$0xf]
    %v299 = vld [vmem:[%s4] sm:$0x1]
    %v301 = vlaneseq
    %v302 = vshrl.u32 %v301, 7
    %v303 = vsub.s32 0, %v302
    %v304 = vrot.slane %v299, %v303
    %v322 = vunpack.c.l.b16 %v283
    %v323 = vunpack.c.l.b16 %v284
    %v324 = vunpack.c.l.b16 %v285
    %v325 = vunpack.c.l.b16 %v286
    %v326 = vunpack.c.l.b16 %v287
    %v327 = vunpack.c.l.b16 %v288
    %v328 = vunpack.c.l.b16 %v289
    %v329 = vunpack.c.l.b16 %v290
    %v330 = vunpack.c.l.b16 %v291
    %v331 = vunpack.c.l.b16 %v292
    %v332 = vunpack.c.l.b16 %v293
    %v333 = vunpack.c.l.b16 %v294
    %v334 = vunpack.c.l.b16 %v295
    %v335 = vunpack.c.l.b16 %v296
    %v336 = vunpack.c.l.b16 %v297
    %v337 = vunpack.c.l.b16 %v298
    %v338 = vpack.c.b16 %v323, %v322
    %v339 = vpack.c.b16 %v325, %v324
    %v340 = vpack.c.b16 %v327, %v326
    %v341 = vpack.c.b16 %v329, %v328
    %v342 = vpack.c.b16 %v331, %v330
    %v343 = vpack.c.b16 %v333, %v332
    %v344 = vpack.c.b16 %v335, %v334
    %v345 = vpack.c.b16 %v337, %v336
    %354 = vmatprep.subr.bf16.mxu0 0
    %355 = vmatpush1.bf16.msra.mxu0 %v345
    %356 = vmatprep.subr.bf16.mxu0 0
    %357 = vmatpush1.bf16.msra.mxu0 %v344
    %358 = vmatprep.subr.bf16.mxu0 0
    %359 = vmatpush1.bf16.msra.mxu0 %v343
    %360 = vmatprep.subr.bf16.mxu0 0
    %361 = vmatpush1.bf16.msra.mxu0 %v342
    %362 = vmatprep.subr.bf16.mxu0 0
    %363 = vmatpush1.bf16.msra.mxu0 %v341
    %364 = vmatprep.subr.bf16.mxu0 0
    %365 = vmatpush1.bf16.msra.mxu0 %v340
    %366 = vmatprep.subr.bf16.mxu0 0
    %367 = vmatpush1.bf16.msra.mxu0 %v339
    %368 = vmatprep.subr.bf16.mxu0 0
    %369 = vmatpush1.bf16.msra.mxu0 %v338
    %370 = vmatprep.subr.bf16.mxu0 0
    %371 = vmatpush2.bf16.msra.mxu0 0
    %372 = vmatprep.subr.bf16.mxu0 0
    %373 = vmatpush2.bf16.msra.mxu0 0
    %374 = vmatprep.subr.bf16.mxu0 0
    %375 = vmatpush2.bf16.msra.mxu0 0
    %376 = vmatprep.subr.bf16.mxu0 0
    %377 = vmatpush2.bf16.msra.mxu0 0
    %378 = vmatprep.subr.bf16.mxu0 0
    %379 = vmatpush2.bf16.msra.mxu0 0
    %380 = vmatprep.subr.bf16.mxu0 0
    %381 = vmatpush2.bf16.msra.mxu0 0
    %382 = vmatprep.subr.bf16.mxu0 0
    %383 = vmatpush2.bf16.msra.mxu0 0
    %384 = vmatprep.subr.bf16.mxu0 0
    %385 = vmatpush2.bf16.msra.mxu0 0
    %386 = vmatprep.mubr.bf16.mxu0 0
    %387 = vmatmul.mubr.bf16.gmra.mxu0 %v279
    %v388 = vpop.f32.mrf.mxu0
    %v389 = vadd.f32 %v304, %v388
    %v390 = vpop.f32.mrf.mxu0
    %v391 = vpop.f32.mrf.mxu0
    %v392 = vadd.f32 %v304, %v391
    %v393 = vpop.f32.mrf.mxu0
    %394 = vmatprep.mubr.bf16.mxu0 0
    %395 = vmatmul.mubr.bf16.gmra.mxu0 %v280
    %v396 = vpop.f32.mrf.mxu0
    %v397 = vadd.f32 %v304, %v396
    %v398 = vpop.f32.mrf.mxu0
    %v399 = vpop.f32.mrf.mxu0
    %v400 = vadd.f32 %v304, %v399
    %v401 = vpop.f32.mrf.mxu0
    %402 = vmatprep.mubr.bf16.mxu0 0
    %403 = vmatmul.mubr.bf16.gmra.mxu0 %v281
    %v404 = vpop.f32.mrf.mxu0
    %v405 = vadd.f32 %v304, %v404
    %v406 = vpop.f32.mrf.mxu0
    %v407 = vpop.f32.mrf.mxu0
    %v408 = vadd.f32 %v304, %v407
    %v409 = vpop.f32.mrf.mxu0
    %410 = vmatprep.mubr.bf16.mxu0 0
    %411 = vmatmul.mubr.bf16.gmra.mxu0 %v282
    %v412 = vpop.f32.mrf.mxu0
    %v413 = vadd.f32 %v304, %v412
    %v414 = vpop.f32.mrf.mxu0
    %v415 = vpop.f32.mrf.mxu0
    %v416 = vadd.f32 %v304, %v415
    %v417 = vpop.f32.mrf.mxu0
    %418 = vdwg.mxu0
    %419 = vmax.xlane.f32.xlu0 %v389
    %v420 = vpop.xlane.xlu0 %419
    %421 = vmax.xlane.f32.xlu0 %v392
    %v422 = vpop.xlane.xlu0 %421
    %423 = vmax.xlane.f32.xlu0 %v397
    %v424 = vpop.xlane.xlu0 %423
    %425 = vmax.xlane.f32.xlu0 %v400
    %v426 = vpop.xlane.xlu0 %425
    %427 = vmax.xlane.f32.xlu0 %v405
    %v428 = vpop.xlane.xlu0 %427
    %429 = vmax.xlane.f32.xlu0 %v408
    %v430 = vpop.xlane.xlu0 %429
    %431 = vmax.xlane.f32.xlu0 %v413
    %v432 = vpop.xlane.xlu0 %431
    %433 = vmax.xlane.f32.xlu0 %v416
    %v434 = vpop.xlane.xlu0 %433
    %v435 = vsub.f32 %v389, %v420
    %v436 = vsub.f32 %v392, %v422
    %v437 = vsub.f32 %v397, %v424
    %v438 = vsub.f32 %v400, %v426
    %v439 = vsub.f32 %v405, %v428
    %v440 = vsub.f32 %v408, %v430
    %v441 = vsub.f32 %v413, %v432
    %v442 = vsub.f32 %v416, %v434
    %v443 = vmul.f32 %v435, 1.442695
    %v444 = vpow.pop %v443
    %v445 = vmul.f32 %v436, 1.442695
    %v446 = vpow.pop %v445
    %v447 = vmul.f32 %v437, 1.442695
    %v448 = vpow.pop %v447
    %v449 = vmul.f32 %v438, 1.442695
    %v450 = vpow.pop %v449
    %v451 = vmul.f32 %v439, 1.442695
    %v452 = vpow.pop %v451
    %v453 = vmul.f32 %v440, 1.442695
    %v454 = vpow.pop %v453
    %v455 = vmul.f32 %v441, 1.442695
    %v456 = vpow.pop %v455
    %v457 = vmul.f32 %v442, 1.442695
    %v458 = vpow.pop %v457
    %459 = vadd.xlane.f32.xlu0 %v444
    %v460 = vpop.xlane.xlu0 %459
    %461 = vadd.xlane.f32.xlu0 %v446
    %v462 = vpop.xlane.xlu0 %461
    %463 = vadd.xlane.f32.xlu0 %v448
    %v464 = vpop.xlane.xlu0 %463
    %465 = vadd.xlane.f32.xlu0 %v450
    %v466 = vpop.xlane.xlu0 %465
    %467 = vadd.xlane.f32.xlu0 %v452
    %v468 = vpop.xlane.xlu0 %467
    %469 = vadd.xlane.f32.xlu0 %v454
    %v470 = vpop.xlane.xlu0 %469
    %471 = vadd.xlane.f32.xlu0 %v456
    %v472 = vpop.xlane.xlu0 %471
    %473 = vadd.xlane.f32.xlu0 %v458
    %v474 = vpop.xlane.xlu0 %473
    %v475 = vrcp.pop %v460
    %v476 = vmul.f32 %v444, %v475
    %v477 = vrcp.pop %v462
    %v478 = vmul.f32 %v446, %v477
    %v479 = vrcp.pop %v464
    %v480 = vmul.f32 %v448, %v479
    %v481 = vrcp.pop %v466
    %v482 = vmul.f32 %v450, %v481
    %v483 = vrcp.pop %v468
    %v484 = vmul.f32 %v452, %v483
    %v485 = vrcp.pop %v470
    %v486 = vmul.f32 %v454, %v485
    %v487 = vrcp.pop %v472
    %v488 = vmul.f32 %v456, %v487
    %v489 = vrcp.pop %v474
    %v490 = vmul.f32 %v458, %v489
    %491 = vst [vmem:[#allocation8] sm:$0xff] %v476
    %492 = vst [vmem:[#allocation8 + $0x8] sm:$0xff] %v478
    %493 = vst [vmem:[#allocation8 + $0x10] sm:$0xff] %v480
    %494 = vst [vmem:[#allocation8 + $0x18] sm:$0xff] %v482
    %495 = vst [vmem:[#allocation8 + $0x20] sm:$0xff] %v484
    %496 = vst [vmem:[#allocation8 + $0x28] sm:$0xff] %v486
    %497 = vst [vmem:[#allocation8 + $0x30] sm:$0xff] %v488
    %498 = vst [vmem:[#allocation8 + $0x38] sm:$0xff] %v490
    // Predicated region
    $region34: #{tpu_custom_call.1} parent=1 // pred_check
      _
    $region35: #{tpu_custom_call.1} parent=1 // pred_check_branch
      %500 = sbr.rel (0) target = $region37
    $region36: #{tpu_custom_call.1} parent=1 // pred_region
      %s502 = ssub.s32 1024, 1024
      %503 = vsyncadd [#allocation4], %s502
      %s504 = sshll.u32 [#allocation8], 4
      %s505 = int_to_ptr.vmem [resolvable:$true] %s504
      %510 = dma.vmem_to_hbm [thread:$0]  %s505, 1024, %s5, [#allocation4], 128, 128, 8
    $region37: #{tpu_custom_call.1} parent=1 // pred_fallthru
      _
    // Predicated region
    $region38: #{tpu_custom_call.1} parent=1 // pred_check
      _
    $region39: #{tpu_custom_call.1} parent=1 // pred_check_branch
      %512 = sbr.rel (0) target = $region41
    $region40: #{tpu_custom_call.1} parent=1 // pred_region
      %513 = dma.done [#allocation4], 1024
    $region41: #{tpu_custom_call.1} parent=1 // pred_fallthru
      _
    %514 = vsyncpa [#allocation3], 1
    %515 = vsyncpa [#allocation6], 1
    %516 = vsyncpa [#allocation4], 1

</llo_original>
